<compile_context>
chip_gen: v7x
topology: tpu7x:2x2x1
jax: 0.10.0
libtpu: 0.0.40
codegen_flags: <defaults>
</compile_context>

<pallas_src>
import functools

import jax
import jax.numpy as jnp
from jax.experimental import pallas as pl
from jax.experimental.pallas import tpu as pltpu


def _fc_kernel(x_ref, w_ref, b_ref, o_ref):
    """Fused linear head on one batch block: o = bf16(x) @ w + b (f32 accumulate).

    The f32->bf16 cast is done here (VPU pack) instead of in the wrapper, so the
    features make exactly one HBM->VMEM trip and no standalone cast kernel runs.
    """
    x_bf16 = x_ref[...].astype(jnp.bfloat16)
    o_ref[...] = (
        jnp.dot(x_bf16, w_ref[...], preferred_element_type=jnp.float32)
        + b_ref[...]
    ).astype(o_ref.dtype)


def _linear_head(features, weight, bias, *, block_b):
    """features: (B, D) f32; weight: (D, Cp) bf16; bias: (1, Cp) f32 -> (B, Cp) f32."""
    B, D = features.shape
    _, Cp = weight.shape
    assert B % block_b == 0
    grid = (B // block_b,)
    return pl.pallas_call(
        _fc_kernel,
        out_shape=jax.ShapeDtypeStruct((B, Cp), jnp.float32),
        grid_spec=pltpu.PrefetchScalarGridSpec(
            num_scalar_prefetch=0,
            grid=grid,
            in_specs=[
                # Feature rows stream per grid step (double-buffered by default).
                pl.BlockSpec((block_b, D), lambda i: (i, 0)),
                # Weight / bias blocks never change across steps -> single buffer.
                pl.BlockSpec((D, Cp), lambda i: (0, 0),
                             pipeline_mode=pl.Buffered(1)),
                pl.BlockSpec((1, Cp), lambda i: (0, 0),
                             pipeline_mode=pl.Buffered(1)),
            ],
            out_specs=pl.BlockSpec((block_b, Cp), lambda i: (i, 0)),
        ),
        compiler_params=pltpu.CompilerParams(
            # Batch axis is embarrassingly parallel -> Mosaic shards the grid
            # steps across both TensorCores on v7x when there are >=2 steps.
            dimension_semantics=("parallel",),
        ),
    )(features, weight, bias)


def _choose_block_b(B):
    """Batch-block heuristic.

    * B < 256: one block -- launch overhead dominates, nothing to shard.
    * B >= 256: at least 2 grid steps (so v7x's two TensorCores both get work),
      with per-step blocks as large as possible up to 1024 rows (v5e/v6e are
      single-TC and mem-bound; bigger blocks amortize ~0.35us/step overhead).
      VMEM at 1024: (1024,512) f32 x2 + (1024,128) f32 x2 + 128KiB weight ~ 5.2 MiB,
      comfortably inside every generation's scoped default (incl. v7x 64 MiB).
    """
    if B < 256:
        return B
    half = -(-B // 2)            # ceil(B/2) -> guarantees >= 2 steps
    block = min(1024, half)
    block = -(-block // 8) * 8   # round up to a sublane multiple
    return block


def prepare_fc_params(fc_weight, fc_bias):
    """One-time parameter prep (do at model init, NOT per forward call).

    fc_weight: (num_class, D) PyTorch nn.Linear layout, f32.
    fc_bias:   (num_class,) f32.
    Returns (w_t, b_p): (D, Cp) bf16 transposed/padded weight, (1, Cp) f32 bias,
    with Cp = num_class rounded up to a multiple of 128 (lane-dense output).
    Cp intentionally stays at one 128-lane tile: the kernel is HBM-bound, so
    padding to the 256-wide MXU on v6e/v7x would only add traffic.
    """
    num_class, D = fc_weight.shape
    Cp = ((num_class + 127) // 128) * 128
    w_t = (
        jnp.zeros((D, Cp), jnp.bfloat16)
        .at[:, :num_class]
        .set(fc_weight.T.astype(jnp.bfloat16))
    )
    b_p = (
        jnp.zeros((1, Cp), jnp.float32)
        .at[0, :num_class]
        .set(fc_bias.astype(jnp.float32))
    )
    return w_t, b_p


@functools.partial(jax.jit, static_argnames=("num_class",))
def net_forward(x, w_t, b_p, *, num_class):
    """Pallas equivalent of Net.forward (post-encoder part).

    x:   (B, 512, 1, 1) encoder output (NCHW, like torch), f32.
    w_t: (512, Cp) bf16 prepared weight (from prepare_fc_params).
    b_p: (1, Cp) f32 prepared bias.
    returns: (B, num_class) f32 logits.
    """
    B = x.shape[0]
    # torch.flatten(x, start_dim=1). Kept in f32: the bf16 cast is fused into
    # the kernel so the features only cross HBM once.
    feature = x.reshape(B, -1)

    block_b = _choose_block_b(B)
    B_pad = -(-B // block_b) * block_b
    if B_pad != B:
        # Pad batch up to a block multiple instead of falling back to one block.
        feature = jnp.pad(feature, ((0, B_pad - B), (0, 0)))

    out_padded = _linear_head(feature, w_t, b_p, block_b=block_b)
    # The padded (B_pad, 128) slab stays lane-dense end-to-end inside the
    # pipeline; consumers that can mask classes >= num_class could take
    # out_padded directly and skip this (non-lane-dense) slice.
    return out_padded[:B, :num_class]


if __name__ == "__main__":
    key = jax.random.PRNGKey(0)
    k_x, k_w, k_b = jax.random.split(key, 3)

    B = 8
    encoder_out_dim = 512   # resnet18-style encoder ('original' path)
    num_class = 10

    # Stand-in for self.f(x): (B, 512, 1, 1) feature map (NCHW).
    x = jax.random.normal(k_x, (B, encoder_out_dim, 1, 1), dtype=jnp.float32)

    # Deterministic fc parameters (nn.Linear(512, num_class), bias=True).
    bound = 1.0 / jnp.sqrt(encoder_out_dim)
    fc_weight = jax.random.uniform(
        k_w, (num_class, encoder_out_dim), minval=-bound, maxval=bound,
        dtype=jnp.float32)
    fc_bias = jax.random.uniform(
        k_b, (num_class,), minval=-bound, maxval=bound, dtype=jnp.float32)

    # One-time parameter preparation (transpose + pad + bf16 cast).
    w_t, b_p = prepare_fc_params(fc_weight, fc_bias)

    out = net_forward(x, w_t, b_p, num_class=num_class)
    out = jax.block_until_ready(out)

    # Reference check in plain JAX (f32); looser tolerance due to bf16 operands.
    ref = x.reshape(B, -1) @ fc_weight.T + fc_bias
    assert out.shape == (B, num_class)
    assert jnp.allclose(out, ref, atol=3e-2, rtol=3e-2), (
        float(jnp.max(jnp.abs(out - ref))))

    print("KERNEL_OK")
</pallas_src>

<mosaic_0001>
module attributes {stable_mosaic.version = 11 : i64} {
  func.func @_fc_kernel(%arg0: i32, %arg1: memref<8x512xf32, #tpu.memory_space<vmem>>, %arg2: memref<512x128xbf16, #tpu.memory_space<vmem>>, %arg3: memref<1x128xf32, #tpu.memory_space<vmem>>, %arg4: memref<8x128xf32, #tpu.memory_space<vmem>>) attributes {dimension_semantics = [#tpu.dimension_semantics<parallel>], iteration_bounds = array<i64: 1>, scalar_prefetch = 0 : i64, scratch_operands = 0 : i64, tpu.core_type = #tpu.core_type<tc>, window_params = [{transform_indices = @transform_0, window_bounds = array<i64: 8, 512>}, {pipeline_mode = #tpu.pipeline_mode<synchronous>, transform_indices = @transform_1, window_bounds = array<i64: 512, 128>}, {pipeline_mode = #tpu.pipeline_mode<synchronous>, transform_indices = @transform_2, window_bounds = array<i64: 1, 128>}, {transform_indices = @transform_3, window_bounds = array<i64: 8, 128>}]} {
    %c0 = arith.constant 0 : index
    %c0_0 = arith.constant 0 : index
    %0 = vector.load %arg1[%c0, %c0_0] : memref<8x512xf32, #tpu.memory_space<vmem>>, vector<8x512xf32>
    %1 = arith.truncf %0 : vector<8x512xf32> to vector<8x512xbf16>
    %c0_1 = arith.constant 0 : index
    %c0_2 = arith.constant 0 : index
    %2 = vector.load %arg2[%c0_1, %c0_2] : memref<512x128xbf16, #tpu.memory_space<vmem>>, vector<512x128xbf16>
    %cst = arith.constant dense<0.000000e+00> : vector<8x128xf32>
    %3 = tpu.matmul %1, %2, %cst {dimension_numbers = #tpu.dot_dimension_numbers<[1], [0], [0], [1], [0, 0, 1, 1], [], []>} : vector<8x512xbf16>, vector<512x128xbf16>, vector<8x128xf32> -> vector<8x128xf32>
    %c0_3 = arith.constant 0 : index
    %c0_4 = arith.constant 0 : index
    %4 = vector.load %arg3[%c0_3, %c0_4] : memref<1x128xf32, #tpu.memory_space<vmem>>, vector<1x128xf32>
    %5 = vector.broadcast %4 : vector<1x128xf32> to vector<8x128xf32>
    %6 = arith.addf %3, %5 : vector<8x128xf32>
    %c0_5 = arith.constant 0 : index
    %c0_6 = arith.constant 0 : index
    %7 = vector.load %arg4[%c0_5, %c0_6] : memref<8x128xf32, #tpu.memory_space<vmem>>, vector<8x128xf32>
    tpu.vector_store %arg4[%c0_5, %c0_6], %6 {strides = array<i32>} : memref<8x128xf32, #tpu.memory_space<vmem>>, vector<8x128xf32>,
    return
  }
  func.func @transform_0(%arg0: i32) -> (i32, i32) {
    %c0_i32 = arith.constant 0 : i32
    %c0_i32_0 = arith.constant 0 : i32
    return %arg0, %c0_i32 : i32, i32
  }
  func.func @transform_1(%arg0: i32) -> (i32, i32) {
    %c0_i32 = arith.constant 0 : i32
    %c0_i32_0 = arith.constant 0 : i32
    %c0_i32_1 = arith.constant 0 : i32
    return %c0_i32, %c0_i32_0 : i32, i32
  }
  func.func @transform_2(%arg0: i32) -> (i32, i32) {
    %c0_i32 = arith.constant 0 : i32
    %c0_i32_0 = arith.constant 0 : i32
    %c0_i32_1 = arith.constant 0 : i32
    return %c0_i32, %c0_i32_0 : i32, i32
  }
  func.func @transform_3(%arg0: i32) -> (i32, i32) {
    %c0_i32 = arith.constant 0 : i32
    %c0_i32_0 = arith.constant 0 : i32
    return %arg0, %c0_i32 : i32, i32
  }
}

</mosaic_0001>

<llo_original>
// kernel: net_forward.1
$region0: #{net_forward.1}
  #allocation0 [shape = 'u32[]', space=smem, size = 0x4, offset = 0x4, fixed_abs, tag = 'smem constant byte address 0x4 - core index']
  #allocation1 [shape = 'u32[144,128]{1,0:T(1,128)}', space=vmem, size = 0x12000, scoped, tag = 'internal scratch']
  %s0 = inlined_call_operand.vmem [shape: f32[8,512], index: 0, kind: input, shape index: {}]
  %s1 = inlined_call_operand.hbm [shape: bf16[512,128], index: 1, kind: input, shape index: {}]
  %s2 = inlined_call_operand.vmem [shape: f32[1,128], index: 2, kind: input, shape index: {}]
  %s3 = inlined_call_operand.hbm [shape: f32[8,128], index: 3, kind: output, shape index: {}]
  %s4 = sld [smem:[#allocation0]]
  $region26: #{net_forward.1} parent=0
    _
  %s6 = ssub.s32 1, %s4
  %s7 = scalar_select 0, %s6, %s4
  $region1: #{net_forward.1} parent=0
    #allocation2 [shape = 'u8[131072]{0}', space=vmem, size = 0x20000, scoped, tag = 'input window, operand 1, single buffered']
    #allocation3 [shape = 's32[1]{0}', space=sflag, size = 0x4, scoped, tag = 'scoped memory for net_forward.1']
    #allocation4 [shape = 's32[1]{0}', space=sflag, size = 0x4, scoped, tag = 'scoped memory for net_forward.1']
    #allocation5 [shape = 'u8[4096]{0}', space=vmem, size = 0x1000, scoped, tag = 'output window, operand 0, single buffered']
    %8 = vsyncpa [#allocation3], 0
    %9 = vsyncpa [#allocation4], 0
    // Predicated region
    $region2: #{net_forward.1} parent=1 // pred_check
      _
    $region3: #{net_forward.1} parent=1 // pred_check_branch
      %11 = sbr.rel (0) target = $region5
    $region4: #{net_forward.1} parent=1 // pred_region
      _
    $region5: #{net_forward.1} parent=1 // pred_fallthru
      _
    // Predicated region
    $region6: #{net_forward.1} parent=1 // pred_check
      _
    $region7: #{net_forward.1} parent=1 // pred_check_branch
      %13 = sbr.rel (0) target = $region9
    $region8: #{net_forward.1} parent=1 // pred_region
      %s15 = ssub.s32 4096, 4096
      %16 = vsyncadd [#allocation3], %s15
      %s17 = sshll.u32 [#allocation2], 4
      %s18 = int_to_ptr.vmem [resolvable:$true] %s17
      %23 = dma.hbm_to_vmem [thread:$0]  %s1, 4096, %s18, [#allocation3], 64, 64, 4
    $region9: #{net_forward.1} parent=1 // pred_fallthru
      _
    // Predicated region
    $region10: #{net_forward.1} parent=1 // pred_check
      _
    $region11: #{net_forward.1} parent=1 // pred_check_branch
      %25 = sbr.rel (0) target = $region13
    $region12: #{net_forward.1} parent=1 // pred_region
      _
    $region13: #{net_forward.1} parent=1 // pred_fallthru
      _
    // Predicated region
    $region14: #{net_forward.1} parent=1 // pred_check
      _
    $region15: #{net_forward.1} parent=1 // pred_check_branch
      %27 = sbr.rel (0) target = $region17
    $region16: #{net_forward.1} parent=1 // pred_region
      %28 = dma.done [#allocation3], 4096
    $region17: #{net_forward.1} parent=1 // pred_fallthru
      _
    %v30 = vld [vmem:[%s0] sm:$0xff]
    %v31 = vld [vmem:[%s0 + $0x8] sm:$0xff]
    %v32 = vld [vmem:[%s0 + $0x10] sm:$0xff]
    %v33 = vld [vmem:[%s0 + $0x18] sm:$0xff]
    %v34 = vpack.c.bf16 %v30, %v30
    %v35 = vpack.c.bf16 %v31, %v31
    %v36 = vpack.c.bf16 %v32, %v32
    %v37 = vpack.c.bf16 %v33, %v33
    %v38 = vld [vmem:[#allocation2] sm:$0xf]
    %v39 = vld [vmem:[#allocation2 + $0x4] sm:$0xf]
    %v40 = vld [vmem:[#allocation2 + $0x8] sm:$0xf]
    %v41 = vld [vmem:[#allocation2 + $0xc] sm:$0xf]
    %v42 = vld [vmem:[#allocation2 + $0x10] sm:$0xf]
    %v43 = vld [vmem:[#allocation2 + $0x14] sm:$0xf]
    %v44 = vld [vmem:[#allocation2 + $0x18] sm:$0xf]
    %v45 = vld [vmem:[#allocation2 + $0x1c] sm:$0xf]
    %v46 = vld [vmem:[#allocation2 + $0x20] sm:$0xf]
    %v47 = vld [vmem:[#allocation2 + $0x24] sm:$0xf]
    %v48 = vld [vmem:[#allocation2 + $0x28] sm:$0xf]
    %v49 = vld [vmem:[#allocation2 + $0x2c] sm:$0xf]
    %v50 = vld [vmem:[#allocation2 + $0x30] sm:$0xf]
    %v51 = vld [vmem:[#allocation2 + $0x34] sm:$0xf]
    %v52 = vld [vmem:[#allocation2 + $0x38] sm:$0xf]
    %v53 = vld [vmem:[#allocation2 + $0x3c] sm:$0xf]
    %v54 = vld [vmem:[#allocation2 + $0x40] sm:$0xf]
    %v55 = vld [vmem:[#allocation2 + $0x44] sm:$0xf]
    %v56 = vld [vmem:[#allocation2 + $0x48] sm:$0xf]
    %v57 = vld [vmem:[#allocation2 + $0x4c] sm:$0xf]
    %v58 = vld [vmem:[#allocation2 + $0x50] sm:$0xf]
    %v59 = vld [vmem:[#allocation2 + $0x54] sm:$0xf]
    %v60 = vld [vmem:[#allocation2 + $0x58] sm:$0xf]
    %v61 = vld [vmem:[#allocation2 + $0x5c] sm:$0xf]
    %v62 = vld [vmem:[#allocation2 + $0x60] sm:$0xf]
    %v63 = vld [vmem:[#allocation2 + $0x64] sm:$0xf]
    %v64 = vld [vmem:[#allocation2 + $0x68] sm:$0xf]
    %v65 = vld [vmem:[#allocation2 + $0x6c] sm:$0xf]
    %v66 = vld [vmem:[#allocation2 + $0x70] sm:$0xf]
    %v67 = vld [vmem:[#allocation2 + $0x74] sm:$0xf]
    %v68 = vld [vmem:[#allocation2 + $0x78] sm:$0xf]
    %v69 = vld [vmem:[#allocation2 + $0x7c] sm:$0xf]
    %v70 = vld [vmem:[#allocation2 + $0x80] sm:$0xf]
    %v71 = vld [vmem:[#allocation2 + $0x84] sm:$0xf]
    %v72 = vld [vmem:[#allocation2 + $0x88] sm:$0xf]
    %v73 = vld [vmem:[#allocation2 + $0x8c] sm:$0xf]
    %v74 = vld [vmem:[#allocation2 + $0x90] sm:$0xf]
    %v75 = vld [vmem:[#allocation2 + $0x94] sm:$0xf]
    %v76 = vld [vmem:[#allocation2 + $0x98] sm:$0xf]
    %v77 = vld [vmem:[#allocation2 + $0x9c] sm:$0xf]
    %v78 = vld [vmem:[#allocation2 + $0xa0] sm:$0xf]
    %v79 = vld [vmem:[#allocation2 + $0xa4] sm:$0xf]
    %v80 = vld [vmem:[#allocation2 + $0xa8] sm:$0xf]
    %v81 = vld [vmem:[#allocation2 + $0xac] sm:$0xf]
    %v82 = vld [vmem:[#allocation2 + $0xb0] sm:$0xf]
    %v83 = vld [vmem:[#allocation2 + $0xb4] sm:$0xf]
    %v84 = vld [vmem:[#allocation2 + $0xb8] sm:$0xf]
    %v85 = vld [vmem:[#allocation2 + $0xbc] sm:$0xf]
    %v86 = vld [vmem:[#allocation2 + $0xc0] sm:$0xf]
    %v87 = vld [vmem:[#allocation2 + $0xc4] sm:$0xf]
    %v88 = vld [vmem:[#allocation2 + $0xc8] sm:$0xf]
    %v89 = vld [vmem:[#allocation2 + $0xcc] sm:$0xf]
    %v90 = vld [vmem:[#allocation2 + $0xd0] sm:$0xf]
    %v91 = vld [vmem:[#allocation2 + $0xd4] sm:$0xf]
    %v92 = vld [vmem:[#allocation2 + $0xd8] sm:$0xf]
    %v93 = vld [vmem:[#allocation2 + $0xdc] sm:$0xf]
    %v94 = vld [vmem:[#allocation2 + $0xe0] sm:$0xf]
    %v95 = vld [vmem:[#allocation2 + $0xe4] sm:$0xf]
    %v96 = vld [vmem:[#allocation2 + $0xe8] sm:$0xf]
    %v97 = vld [vmem:[#allocation2 + $0xec] sm:$0xf]
    %v98 = vld [vmem:[#allocation2 + $0xf0] sm:$0xf]
    %v99 = vld [vmem:[#allocation2 + $0xf4] sm:$0xf]
    %v100 = vld [vmem:[#allocation2 + $0xf8] sm:$0xf]
    %v101 = vld [vmem:[#allocation2 + $0xfc] sm:$0xf]
    %v102 = vld [vmem:[%s2] sm:$0x1]
    %v104 = vlaneseq
    %v105 = vshrl.u32 %v104, 7
    %v106 = vsub.s32 0, %v105
    %v107 = vrot.slane %v102, %v106
    %v173 = vunpack.c.l.b16 %v38
    %v174 = vunpack.c.l.b16 %v39
    %v175 = vunpack.c.l.b16 %v40
    %v176 = vunpack.c.l.b16 %v41
    %v177 = vunpack.c.l.b16 %v42
    %v178 = vunpack.c.l.b16 %v43
    %v179 = vunpack.c.l.b16 %v44
    %v180 = vunpack.c.l.b16 %v45
    %v181 = vunpack.c.l.b16 %v46
    %v182 = vunpack.c.l.b16 %v47
    %v183 = vunpack.c.l.b16 %v48
    %v184 = vunpack.c.l.b16 %v49
    %v185 = vunpack.c.l.b16 %v50
    %v186 = vunpack.c.l.b16 %v51
    %v187 = vunpack.c.l.b16 %v52
    %v188 = vunpack.c.l.b16 %v53
    %v189 = vunpack.c.l.b16 %v54
    %v190 = vunpack.c.l.b16 %v55
    %v191 = vunpack.c.l.b16 %v56
    %v192 = vunpack.c.l.b16 %v57
    %v193 = vunpack.c.l.b16 %v58
    %v194 = vunpack.c.l.b16 %v59
    %v195 = vunpack.c.l.b16 %v60
    %v196 = vunpack.c.l.b16 %v61
    %v197 = vunpack.c.l.b16 %v62
    %v198 = vunpack.c.l.b16 %v63
    %v199 = vunpack.c.l.b16 %v64
    %v200 = vunpack.c.l.b16 %v65
    %v201 = vunpack.c.l.b16 %v66
    %v202 = vunpack.c.l.b16 %v67
    %v203 = vunpack.c.l.b16 %v68
    %v204 = vunpack.c.l.b16 %v69
    %v205 = vunpack.c.l.b16 %v70
    %v206 = vunpack.c.l.b16 %v71
    %v207 = vunpack.c.l.b16 %v72
    %v208 = vunpack.c.l.b16 %v73
    %v209 = vunpack.c.l.b16 %v74
    %v210 = vunpack.c.l.b16 %v75
    %v211 = vunpack.c.l.b16 %v76
    %v212 = vunpack.c.l.b16 %v77
    %v213 = vunpack.c.l.b16 %v78
    %v214 = vunpack.c.l.b16 %v79
    %v215 = vunpack.c.l.b16 %v80
    %v216 = vunpack.c.l.b16 %v81
    %v217 = vunpack.c.l.b16 %v82
    %v218 = vunpack.c.l.b16 %v83
    %v219 = vunpack.c.l.b16 %v84
    %v220 = vunpack.c.l.b16 %v85
    %v221 = vunpack.c.l.b16 %v86
    %v222 = vunpack.c.l.b16 %v87
    %v223 = vunpack.c.l.b16 %v88
    %v224 = vunpack.c.l.b16 %v89
    %v225 = vunpack.c.l.b16 %v90
    %v226 = vunpack.c.l.b16 %v91
    %v227 = vunpack.c.l.b16 %v92
    %v228 = vunpack.c.l.b16 %v93
    %v229 = vunpack.c.l.b16 %v94
    %v230 = vunpack.c.l.b16 %v95
    %v231 = vunpack.c.l.b16 %v96
    %v232 = vunpack.c.l.b16 %v97
    %v233 = vunpack.c.l.b16 %v98
    %v234 = vunpack.c.l.b16 %v99
    %v235 = vunpack.c.l.b16 %v100
    %v236 = vunpack.c.l.b16 %v101
    %v237 = vpack.c.b16 %v174, %v173
    %v238 = vpack.c.b16 %v176, %v175
    %v239 = vpack.c.b16 %v178, %v177
    %v240 = vpack.c.b16 %v180, %v179
    %v241 = vpack.c.b16 %v182, %v181
    %v242 = vpack.c.b16 %v184, %v183
    %v243 = vpack.c.b16 %v186, %v185
    %v244 = vpack.c.b16 %v188, %v187
    %v245 = vpack.c.b16 %v190, %v189
    %v246 = vpack.c.b16 %v192, %v191
    %v247 = vpack.c.b16 %v194, %v193
    %v248 = vpack.c.b16 %v196, %v195
    %v249 = vpack.c.b16 %v198, %v197
    %v250 = vpack.c.b16 %v200, %v199
    %v251 = vpack.c.b16 %v202, %v201
    %v252 = vpack.c.b16 %v204, %v203
    %v253 = vpack.c.b16 %v206, %v205
    %v254 = vpack.c.b16 %v208, %v207
    %v255 = vpack.c.b16 %v210, %v209
    %v256 = vpack.c.b16 %v212, %v211
    %v257 = vpack.c.b16 %v214, %v213
    %v258 = vpack.c.b16 %v216, %v215
    %v259 = vpack.c.b16 %v218, %v217
    %v260 = vpack.c.b16 %v220, %v219
    %v261 = vpack.c.b16 %v222, %v221
    %v262 = vpack.c.b16 %v224, %v223
    %v263 = vpack.c.b16 %v226, %v225
    %v264 = vpack.c.b16 %v228, %v227
    %v265 = vpack.c.b16 %v230, %v229
    %v266 = vpack.c.b16 %v232, %v231
    %v267 = vpack.c.b16 %v234, %v233
    %v268 = vpack.c.b16 %v236, %v235
    %301 = vmatprep.subr.bf16.mxu0 0
    %302 = vmatpush1.bf16.msra.mxu0 %v237
    %303 = vmatprep.subr.bf16.mxu0 0
    %304 = vmatpush1.bf16.msra.mxu0 %v238
    %305 = vmatprep.subr.bf16.mxu0 0
    %306 = vmatpush1.bf16.msra.mxu0 %v239
    %307 = vmatprep.subr.bf16.mxu0 0
    %308 = vmatpush1.bf16.msra.mxu0 %v240
    %309 = vmatprep.subr.bf16.mxu0 0
    %310 = vmatpush1.bf16.msra.mxu0 %v241
    %311 = vmatprep.subr.bf16.mxu0 0
    %312 = vmatpush1.bf16.msra.mxu0 %v242
    %313 = vmatprep.subr.bf16.mxu0 0
    %314 = vmatpush1.bf16.msra.mxu0 %v243
    %315 = vmatprep.subr.bf16.mxu0 0
    %316 = vmatpush1.bf16.msra.mxu0 %v244
    %317 = vmatprep.subr.bf16.mxu0 0
    %318 = vmatpush1.bf16.msra.mxu0 %v245
    %319 = vmatprep.subr.bf16.mxu0 0
    %320 = vmatpush1.bf16.msra.mxu0 %v246
    %321 = vmatprep.subr.bf16.mxu0 0
    %322 = vmatpush1.bf16.msra.mxu0 %v247
    %323 = vmatprep.subr.bf16.mxu0 0
    %324 = vmatpush1.bf16.msra.mxu0 %v248
    %325 = vmatprep.subr.bf16.mxu0 0
    %326 = vmatpush1.bf16.msra.mxu0 %v249
    %327 = vmatprep.subr.bf16.mxu0 0
    %328 = vmatpush1.bf16.msra.mxu0 %v250
    %329 = vmatprep.subr.bf16.mxu0 0
    %330 = vmatpush1.bf16.msra.mxu0 %v251
    %331 = vmatprep.subr.bf16.mxu0 0
    %332 = vmatpush1.bf16.msra.mxu0 %v252
    %333 = vmatprep.mubr.bf16.mxu0 %v35
    %334 = vmatmul.mubr.bf16.gmra.mrb[0].mxu0 %v34
    %v335 = vpop.f32.mrb[0].mxu0
    %v336 = vadd.f32 %v107, %v335
    %v337 = vpop.f32.mrb[0].mxu0
    %v338 = vpop.f32.mrb[0].mxu0
    %v339 = vpop.f32.mrb[0].mxu0
    %340 = vdwg.mxu0
    %341 = vmatprep.subr.bf16.mxu0 0
    %342 = vmatpush1.bf16.msra.mxu0 %v253
    %343 = vmatprep.subr.bf16.mxu0 0
    %344 = vmatpush1.bf16.msra.mxu0 %v254
    %345 = vmatprep.subr.bf16.mxu0 0
    %346 = vmatpush1.bf16.msra.mxu0 %v255
    %347 = vmatprep.subr.bf16.mxu0 0
    %348 = vmatpush1.bf16.msra.mxu0 %v256
    %349 = vmatprep.subr.bf16.mxu0 0
    %350 = vmatpush1.bf16.msra.mxu0 %v257
    %351 = vmatprep.subr.bf16.mxu0 0
    %352 = vmatpush1.bf16.msra.mxu0 %v258
    %353 = vmatprep.subr.bf16.mxu0 0
    %354 = vmatpush1.bf16.msra.mxu0 %v259
    %355 = vmatprep.subr.bf16.mxu0 0
    %356 = vmatpush1.bf16.msra.mxu0 %v260
    %357 = vmatprep.subr.bf16.mxu0 0
    %358 = vmatpush1.bf16.msra.mxu0 %v261
    %359 = vmatprep.subr.bf16.mxu0 0
    %360 = vmatpush1.bf16.msra.mxu0 %v262
    %361 = vmatprep.subr.bf16.mxu0 0
    %362 = vmatpush1.bf16.msra.mxu0 %v263
    %363 = vmatprep.subr.bf16.mxu0 0
    %364 = vmatpush1.bf16.msra.mxu0 %v264
    %365 = vmatprep.subr.bf16.mxu0 0
    %366 = vmatpush1.bf16.msra.mxu0 %v265
    %367 = vmatprep.subr.bf16.mxu0 0
    %368 = vmatpush1.bf16.msra.mxu0 %v266
    %369 = vmatprep.subr.bf16.mxu0 0
    %370 = vmatpush1.bf16.msra.mxu0 %v267
    %371 = vmatprep.subr.bf16.mxu0 0
    %372 = vmatpush1.bf16.msra.mxu0 %v268
    %373 = vmatprep.mubr.bf16.mxu0 %v37
    %374 = vmatmul.mubr.bf16.gmra.mrb[0].mxu0 %v36
    %v375 = vpop.f32.mrb[0].mxu0
    %v376 = vadd.f32 %v336, %v375
    %v377 = vpop.f32.mrb[0].mxu0
    %v378 = vpop.f32.mrb[0].mxu0
    %v379 = vpop.f32.mrb[0].mxu0
    %380 = vdwg.mxu0
    %381 = vst [vmem:[#allocation5] sm:$0xff] %v376
    // Predicated region
    $region18: #{net_forward.1} parent=1 // pred_check
      _
    $region19: #{net_forward.1} parent=1 // pred_check_branch
      %383 = sbr.rel (0) target = $region21
    $region20: #{net_forward.1} parent=1 // pred_region
      %s385 = ssub.s32 128, 128
      %386 = vsyncadd [#allocation4], %s385
      %s388 = sshll.u32 [#allocation5], 4
      %s389 = int_to_ptr.vmem [resolvable:$true] %s388
      %391 = dma.vmem_to_hbm [thread:$0]  %s389, 128, %s3, [#allocation4]
    $region21: #{net_forward.1} parent=1 // pred_fallthru
      _
    // Predicated region
    $region22: #{net_forward.1} parent=1 // pred_check
      _
    $region23: #{net_forward.1} parent=1 // pred_check_branch
      %393 = sbr.rel (0) target = $region25
    $region24: #{net_forward.1} parent=1 // pred_region
      %394 = dma.done [#allocation4], 128
    $region25: #{net_forward.1} parent=1 // pred_fallthru
      _
    %395 = vsyncpa [#allocation3], 1
    %396 = vsyncpa [#allocation4], 1

</llo_original>
